<compile_context>
chip_gen: v5e
topology: v5e:2x2
jax: 0.10.0
libtpu: 0.0.40
codegen_flags: <defaults>
</compile_context>

<pallas_src>
import functools

import jax
import jax.numpy as jnp
from jax.experimental import pallas as pl
from jax.experimental.pallas import tpu as pltpu


def _round_up(x, m):
    return (x + m - 1) // m * m


def _prob_kernel(logits_ref, posmap_ref, prob_ref):
    # Elementwise sigmoid (VPU/EUP, f32) then one MXU GEMM against the padded
    # positive map.  Cast happens inside the kernel so HBM traffic stays at the
    # incoming dtype width.
    p = jax.nn.sigmoid(logits_ref[...].astype(jnp.float32))          # (tm, T)
    prob_ref[...] = jnp.dot(p, posmap_ref[...],
                            preferred_element_type=jnp.float32)      # (tm, Cpad)


def post_process_grounding(out_logits, out_bbox, target_sizes, positive_map,
                           *, num_select):
    B, Q, T = out_logits.shape
    C = positive_map.shape[0]

    # ---- prob = sigmoid(logits) @ positive_map.T as one lane-dense GEMM ----
    rows = B * Q
    # Tile rows: multiple of 8, capped at 512; aim for >= 2 grid steps so the
    # v7x dual TensorCores both get work on the "parallel" axis.
    tm = min(512, _round_up(max(pl.cdiv(rows, 2), 8), 8))
    rows_pad = _round_up(rows, tm)
    c_pad = _round_up(C, 128)

    logits_2d = out_logits.reshape(rows, T)          # keep incoming dtype
    if rows_pad != rows:
        logits_2d = jnp.pad(logits_2d, ((0, rows_pad - rows), (0, 0)))
    # (T, Cpad) with zero columns for padding; grid-invariant operand.
    posmap_t = jnp.pad(positive_map.astype(jnp.float32).T,
                       ((0, 0), (0, c_pad - C)))

    prob_pad = pl.pallas_call(
        _prob_kernel,
        out_shape=jax.ShapeDtypeStruct((rows_pad, c_pad), jnp.float32),
        grid=(rows_pad // tm,),
        in_specs=[pl.BlockSpec((tm, T), lambda i: (i, 0)),
                  pl.BlockSpec((T, c_pad), lambda i: (0, 0))],
        out_specs=pl.BlockSpec((tm, c_pad), lambda i: (i, 0)),
        compiler_params=pltpu.CompilerParams(
            dimension_semantics=("parallel",)),
    )(logits_2d, posmap_t)

    # Strip padding BEFORE top_k: padded class columns are exactly 0 (could tie
    # with real scores) and padded rows are garbage.
    prob = prob_pad[:rows, :C].reshape(B, Q, C)

    # ---- top-k over the flattened (Q*C) scores per batch element -----------
    scores, topk_idx = jax.lax.top_k(prob.reshape(B, Q * C), num_select)
    topk_boxes = topk_idx // C
    labels = topk_idx % C

    # ---- gather, cxcywh -> (x, y, w, h) shift, per-image scaling -----------
    # Only num_select*4 values per image after the gather; plain JAX is cheaper
    # than any kernel launch here.  (Shift-before/after-gather are equivalent.)
    boxes_sel = jnp.take_along_axis(out_bbox.astype(jnp.float32),
                                    topk_boxes[:, :, None], axis=1)  # (B, S, 4)
    xy = boxes_sel[..., :2] - boxes_sel[..., 2:] * 0.5
    boxes_xywh = jnp.concatenate([xy, boxes_sel[..., 2:]], axis=-1)

    img_h = target_sizes[:, 0].astype(jnp.float32)
    img_w = target_sizes[:, 1].astype(jnp.float32)
    scale_fct = jnp.stack([img_w, img_h, img_w, img_h], axis=1)      # (B, 4)
    boxes = boxes_xywh * scale_fct[:, None, :]
    return boxes, labels, scores


if __name__ == "__main__":
    key = jax.random.PRNGKey(0)
    B, Q, T = 2, 16, 256          # batch, queries, token-logit dim (always 256)
    num_cat = 4
    C = num_cat + 1               # +1 background row (all zeros), as in __init__
    num_select = 10               # must be <= Q * C

    k1, k2 = jax.random.split(key)
    out_logits = jax.random.normal(k1, (B, Q, T), dtype=jnp.float32)
    out_bbox = jax.random.uniform(k2, (B, Q, 4), dtype=jnp.float32,
                                  minval=0.05, maxval=0.5)             # cxcywh
    target_sizes = jnp.array([[480.0, 640.0], [600.0, 800.0]],
                             dtype=jnp.float32)                        # (h, w)

    # Deterministic synthetic positive_map: row 0 = background (zeros),
    # each category maps uniformly to two token positions (rows sum to 1).
    # TODO(synk): real module builds this from a tokenizer + category spans.
    positive_map = jnp.zeros((C, T), dtype=jnp.float32)
    for i in range(1, C):
        positive_map = positive_map.at[i, 3 * i].set(0.5)
        positive_map = positive_map.at[i, 3 * i + 1].set(0.5)

    fn = jax.jit(functools.partial(post_process_grounding,
                                   num_select=num_select))
    boxes, labels, scores = fn(out_logits, out_bbox, target_sizes, positive_map)
    jax.block_until_ready((boxes, labels, scores))

    assert boxes.shape == (B, num_select, 4)
    assert labels.shape == (B, num_select)
    assert scores.shape == (B, num_select)
    print("KERNEL_OK")
</pallas_src>

<mosaic_0001>
module attributes {stable_mosaic.version = 11 : i64} {
  func.func @_prob_kernel(%arg0: i32, %arg1: memref<16x256xf32, #tpu.memory_space<vmem>>, %arg2: memref<256x128xf32, #tpu.memory_space<vmem>>, %arg3: memref<16x128xf32, #tpu.memory_space<vmem>>) attributes {dimension_semantics = [#tpu.dimension_semantics<parallel>], iteration_bounds = array<i64: 2>, scalar_prefetch = 0 : i64, scratch_operands = 0 : i64, tpu.core_type = #tpu.core_type<tc>, window_params = [{transform_indices = @transform_0, window_bounds = array<i64: 16, 256>}, {pipeline_mode = #tpu.pipeline_mode<synchronous>, transform_indices = @transform_1, window_bounds = array<i64: 256, 128>}, {transform_indices = @transform_2, window_bounds = array<i64: 16, 128>}]} {
    %c0 = arith.constant 0 : index
    %c0_0 = arith.constant 0 : index
    %0 = vector.load %arg1[%c0, %c0_0] : memref<16x256xf32, #tpu.memory_space<vmem>>, vector<16x256xf32>
    %1 = arith.negf %0 : vector<16x256xf32>
    %2 = math.exp %1 : vector<16x256xf32>
    %cst = arith.constant 1.000000e+00 : f32
    %3 = vector.broadcast %cst : f32 to vector<16x256xf32>
    %4 = arith.addf %3, %2 : vector<16x256xf32>
    %5 = arith.divf %3, %4 : vector<16x256xf32>
    %c0_1 = arith.constant 0 : index
    %c0_2 = arith.constant 0 : index
    %6 = vector.load %arg2[%c0_1, %c0_2] : memref<256x128xf32, #tpu.memory_space<vmem>>, vector<256x128xf32>
    %cst_3 = arith.constant dense<0.000000e+00> : vector<16x128xf32>
    %7 = tpu.matmul %5, %6, %cst_3 {dimension_numbers = #tpu.dot_dimension_numbers<[1], [0], [0], [1], [0, 0, 1, 1], [], []>} : vector<16x256xf32>, vector<256x128xf32>, vector<16x128xf32> -> vector<16x128xf32>
    %c0_4 = arith.constant 0 : index
    %c0_5 = arith.constant 0 : index
    %8 = vector.load %arg3[%c0_4, %c0_5] : memref<16x128xf32, #tpu.memory_space<vmem>>, vector<16x128xf32>
    tpu.vector_store %arg3[%c0_4, %c0_5], %7 {strides = array<i32>} : memref<16x128xf32, #tpu.memory_space<vmem>>, vector<16x128xf32>,
    return
  }
  func.func @transform_0(%arg0: i32) -> (i32, i32) {
    %c0_i32 = arith.constant 0 : i32
    %c0_i32_0 = arith.constant 0 : i32
    return %arg0, %c0_i32 : i32, i32
  }
  func.func @transform_1(%arg0: i32) -> (i32, i32) {
    %c0_i32 = arith.constant 0 : i32
    %c0_i32_0 = arith.constant 0 : i32
    %c0_i32_1 = arith.constant 0 : i32
    return %c0_i32, %c0_i32_0 : i32, i32
  }
  func.func @transform_2(%arg0: i32) -> (i32, i32) {
    %c0_i32 = arith.constant 0 : i32
    %c0_i32_0 = arith.constant 0 : i32
    return %arg0, %c0_i32 : i32, i32
  }
}

</mosaic_0001>

<llo_original>
// kernel: post_process_grounding.1
$region0: #{post_process_grounding.1}
  #allocation0 [shape = 'u32[]', space=smem, size = 0x4, offset = 0x4, fixed_abs, tag = 'smem constant byte address 0x4 - core index']
  #allocation1 [shape = 'u32[72,128]{1,0:T(1,128)}', space=vmem, size = 0x9000, scoped, tag = 'internal scratch']
  %s0 = inlined_call_operand.vmem [shape: f32[32,256], index: 0, kind: input, shape index: {}]
  %s1 = inlined_call_operand.vmem [shape: f32[256,128], index: 1, kind: input, shape index: {}]
  %s2 = inlined_call_operand.vmem [shape: f32[32,128], index: 2, kind: output, shape index: {}]
  %s3 = sld [smem:[#allocation0]]
  $region41: #{post_process_grounding.1} parent=0
    _
  %s5 = ssub.s32 1, %s3
  %s6 = scalar_select 0, %s5, %s3
  loop: start=0, step=1, limit=4
  $region2: #{post_process_grounding.1} parent=0 // loop_pre_header
    _
  $region3: #{post_process_grounding.1} parent=0 // loop_header
    %s8 = sphi 0, %s12
    %p9 = scmp.ge.s32.totalorder %s8, 4
    %s18 = sphi 0, %s20
    %s21 = sphi 0, %s18
    %s22 = sphi 0, %s21
    %s38 = sphi 0, %s22
    %s42 = sphi 0, %s42
    %s44 = sphi 0, %s42
    %s45 = sphi 0, %s44
    %s59 = sphi 0, %s45
    %s65 = sphi 0, %s67
    %s68 = sphi 0, %s65
    %s69 = sphi 0, %s68
    %s85 = sphi 0, %s69
  $region4: #{post_process_grounding.1} parent=0 // loop_header_branch
    %11 = sbr.rel (%p9) target = $region8
  $region5: #{post_process_grounding.1} parent=0 // loop_body
    %s13 = ssub.s32 %s8, 1
    %s14 = ssub.s32 %s8, 2
    %s15 = sadd.s32 %s8, 1
    %s16 = ssub.s32 %s8, %s15
    %p17 = scmp.eq.s32.totalorder %s16, 0
    %s19 = sadd.s32 %s18, 1
    %s20 = scalar_select %p17, %s18, %s19
    %p23 = pneg %p17
    %p24 = scmp.eq.s32.totalorder %s8, 1
    %p25 = por %p23, %p24
    %p26 = scmp.ne.s32.totalorder %s18, %s21
    %p27 = scmp.eq.s32.totalorder %s8, 0
    %p28 = por %p26, %p27
    %p29 = scmp.ne.s32.totalorder %s18, %s21
    %p30 = scmp.eq.s32.totalorder %s13, 1
    %p31 = por %p29, %p30
    %p32 = scmp.ne.s32.totalorder %s21, %s22
    %p33 = scmp.eq.s32.totalorder %s13, 0
    %p34 = por %p32, %p33
    %p35 = scmp.ne.s32.totalorder %s21, %s22
    %p36 = scmp.eq.s32.totalorder %s14, 1
    %p37 = por %p35, %p36
    %p39 = scmp.ne.s32.totalorder %s22, %s38
    %p40 = scmp.eq.s32.totalorder %s14, 0
    %p41 = por %p39, %p40
    %s43 = sadd.s32 %s42, 1
    %p46 = scmp.eq.s32.totalorder %s8, 1
    %p47 = scmp.ne.s32.totalorder %s42, %s44
    %p48 = scmp.eq.s32.totalorder %s8, 0
    %p49 = por %p47, %p48
    %p50 = scmp.ne.s32.totalorder %s42, %s44
    %p51 = scmp.eq.s32.totalorder %s13, 1
    %p52 = por %p50, %p51
    %p53 = scmp.ne.s32.totalorder %s44, %s45
    %p54 = scmp.eq.s32.totalorder %s13, 0
    %p55 = por %p53, %p54
    %p56 = scmp.ne.s32.totalorder %s44, %s45
    %p57 = scmp.eq.s32.totalorder %s14, 1
    %p58 = por %p56, %p57
    %p60 = scmp.ne.s32.totalorder %s45, %s59
    %p61 = scmp.eq.s32.totalorder %s14, 0
    %p62 = por %p60, %p61
    %s63 = ssub.s32 %s8, %s15
    %p64 = scmp.eq.s32.totalorder %s63, 0
    %s66 = sadd.s32 %s65, 1
    %s67 = scalar_select %p64, %s65, %s66
    %p70 = pneg %p64
    %p71 = scmp.eq.s32.totalorder %s8, 1
    %p72 = por %p70, %p71
    %p73 = scmp.ne.s32.totalorder %s65, %s68
    %p74 = scmp.eq.s32.totalorder %s8, 0
    %p75 = por %p73, %p74
    %p76 = scmp.ne.s32.totalorder %s65, %s68
    %p77 = scmp.eq.s32.totalorder %s13, 1
    %p78 = por %p76, %p77
    %p79 = scmp.ne.s32.totalorder %s68, %s69
    %p80 = scmp.eq.s32.totalorder %s13, 0
    %p81 = por %p79, %p80
    %p82 = scmp.ne.s32.totalorder %s68, %s69
    %p83 = scmp.eq.s32.totalorder %s14, 1
    %p84 = por %p82, %p83
    %p86 = scmp.ne.s32.totalorder %s69, %s85
    %p87 = scmp.eq.s32.totalorder %s14, 0
    %p88 = por %p86, %p87
    %p89 = scmp.le.s32.totalorder 1, %s8
    %p90 = scmp.lt.s32.totalorder %s8, 3
    %p91 = pnand %p89, %p90
    %p92 = pneg %p91
    // Predicated region
    $region9: #{post_process_grounding.1} parent=5 // pred_check
      _
    $region10: #{post_process_grounding.1} parent=5 // pred_check_branch
      %94 = sbr.rel (%p91) target = $region12
    $region11: #{post_process_grounding.1} parent=5 // pred_region
      %s95 = ssub.s32 %s8, 1
      // Predicated region
      $region13: #{post_process_grounding.1} parent=11 // pred_check
        %p96 = pneg %p55
      $region14: #{post_process_grounding.1} parent=11 // pred_check_branch
        %98 = sbr.rel (%p96) target = $region16
      $region15: #{post_process_grounding.1} parent=11 // pred_region
        _
      $region16: #{post_process_grounding.1} parent=11 // pred_fallthru
        _
    $region12: #{post_process_grounding.1} parent=5 // pred_fallthru
      _
    %p99 = scmp.lt.s32.totalorder %s8, 2
    // Predicated region
    $region17: #{post_process_grounding.1} parent=5 // pred_check
      %p100 = pneg %p99
    $region18: #{post_process_grounding.1} parent=5 // pred_check_branch
      %102 = sbr.rel (%p100) target = $region20
    $region19: #{post_process_grounding.1} parent=5 // pred_region
      // Predicated region
      $region21: #{post_process_grounding.1} parent=19 // pred_check
        %p103 = pneg %p28
      $region22: #{post_process_grounding.1} parent=19 // pred_check_branch
        %105 = sbr.rel (%p103) target = $region24
      $region23: #{post_process_grounding.1} parent=19 // pred_region
        %s106 = smul.u32 2, %s8
        %p107 = scmp.lt.s32.totalorder %s106, 3
        %s108 = scalar_select %p107, %s106, 3
        %s109 = smul.addr %s108, 2
        %s110 = smul.addr %s109, 8
        %s111 = scalar_lea.vmem %s0, %s110
        %s112 = smul.u32 2, %s8
      $region24: #{post_process_grounding.1} parent=19 // pred_fallthru
        _
    $region20: #{post_process_grounding.1} parent=5 // pred_fallthru
      _
    %p113 = scmp.le.s32.totalorder 1, %s8
    %p114 = scmp.lt.s32.totalorder %s8, 3
    %p115 = pnand %p113, %p114
    %p116 = pneg %p115
    // Predicated region
    $region25: #{post_process_grounding.1} parent=5 // pred_check
      _
    $region26: #{post_process_grounding.1} parent=5 // pred_check_branch
      %118 = sbr.rel (%p115) target = $region28
    $region27: #{post_process_grounding.1} parent=5 // pred_region
      %s119 = ssub.s32 %s8, 1
      %s120 = smul.u32 2, %s13
      %p121 = scmp.lt.s32.totalorder %s120, 3
      %s122 = scalar_select %p121, %s120, 3
      %s123 = smul.addr %s122, 2
      %s124 = smul.addr %s123, 8
      %s125 = scalar_lea.vmem %s0, %s124
      %p126 = pneg %p34
      %p127 = pneg %p31
      %p128 = pneg %p55
      %p129 = pneg %p52
      %p130 = pneg %p81
      %p131 = pneg %p78
      %s132 = smul.u32 2, %s13
      %p133 = scmp.lt.s32.totalorder %s132, 3
      %s134 = scalar_select %p133, %s132, 3
      %s135 = smul.addr %s134, 8
      %s136 = scalar_lea.vmem %s2, %s135
      %s137 = smul.u32 2, %s13
      %p138 = scmp.lt.s32.totalorder %s137, 3
      %s139 = scalar_select %p138, %s137, 3
      %s140 = smul.addr %s139, 2
      %s141 = smul.addr %s140, 8
      %s142 = scalar_lea.vmem %s0, %s141
      %s143 = smul.u32 2, %s13
      %s144 = smul.u32 2, %s13
      %p145 = scmp.lt.s32.totalorder %s144, 3
      %s146 = scalar_select %p145, %s144, 3
      %s147 = smul.addr %s146, 8
      %s148 = scalar_lea.vmem %s2, %s147
      %s149 = smul.u32 2, %s13
      %v150 = vld [vmem:[%s142] sm:$0xff]
      %v151 = vld [vmem:[%s142 + $0x8] sm:$0xff]
      %v152 = vld [vmem:[%s142 + $0x10] sm:$0xff]
      %v153 = vld [vmem:[%s142 + $0x18] sm:$0xff]
      %v154 = vxor.u32 %v150, 2147483648
      %v155 = vxor.u32 %v151, 2147483648
      %v156 = vxor.u32 %v152, 2147483648
      %v157 = vxor.u32 %v153, 2147483648
      %v158 = vmul.f32 %v154, 1.442695
      %v159 = vpow.pop %v158
      %v160 = vmul.f32 %v155, 1.442695
      %v161 = vpow.pop %v160
      %v162 = vmul.f32 %v156, 1.442695
      %v163 = vpow.pop %v162
      %v164 = vmul.f32 %v157, 1.442695
      %v165 = vpow.pop %v164
      %v166 = vadd.f32 %v159, 1.0
      %v167 = vadd.f32 %v161, 1.0
      %v168 = vadd.f32 %v163, 1.0
      %v169 = vadd.f32 %v165, 1.0
      %v170 = vrcp.pop %v166
      %v171 = vmul.f32 %v166, %v170
      %v172 = vsub.f32 1.0, %v171
      %v173 = vmul.f32 %v170, %v172
      %v174 = vadd.f32 %v170, %v173
      %vm175 = vweird.f32 %v166
      %vm176 = vweird.f32 %v170
      %vm177 = vmor %vm175, %vm176
      %v178 = vsel %vm177, %v170, %v174
      %v179 = vand.u32 2147483647, %v166
      %vm180 = vcmp.eq.f32.partialorder %v179, 8.507059e+37
      %v181 = vand.u32 %v166, 2147483648
      %v182 = vor.u32 1.1754944e-38, %v181
      %v183 = vsel %vm180, %v182, %v178
      %v184 = vmul.f32 1.0, %v183
      %v185 = vrcp.pop %v167
      %v186 = vmul.f32 %v167, %v185
      %v187 = vsub.f32 1.0, %v186
      %v188 = vmul.f32 %v185, %v187
      %v189 = vadd.f32 %v185, %v188
      %vm190 = vweird.f32 %v167
      %vm191 = vweird.f32 %v185
      %vm192 = vmor %vm190, %vm191
      %v193 = vsel %vm192, %v185, %v189
      %v194 = vand.u32 2147483647, %v167
      %vm195 = vcmp.eq.f32.partialorder %v194, 8.507059e+37
      %v196 = vand.u32 %v167, 2147483648
      %v197 = vor.u32 1.1754944e-38, %v196
      %v198 = vsel %vm195, %v197, %v193
      %v199 = vmul.f32 1.0, %v198
      %v200 = vrcp.pop %v168
      %v201 = vmul.f32 %v168, %v200
      %v202 = vsub.f32 1.0, %v201
      %v203 = vmul.f32 %v200, %v202
      %v204 = vadd.f32 %v200, %v203
      %vm205 = vweird.f32 %v168
      %vm206 = vweird.f32 %v200
      %vm207 = vmor %vm205, %vm206
      %v208 = vsel %vm207, %v200, %v204
      %v209 = vand.u32 2147483647, %v168
      %vm210 = vcmp.eq.f32.partialorder %v209, 8.507059e+37
      %v211 = vand.u32 %v168, 2147483648
      %v212 = vor.u32 1.1754944e-38, %v211
      %v213 = vsel %vm210, %v212, %v208
      %v214 = vmul.f32 1.0, %v213
      %v215 = vrcp.pop %v169
      %v216 = vmul.f32 %v169, %v215
      %v217 = vsub.f32 1.0, %v216
      %v218 = vmul.f32 %v215, %v217
      %v219 = vadd.f32 %v215, %v218
      %vm220 = vweird.f32 %v169
      %vm221 = vweird.f32 %v215
      %vm222 = vmor %vm220, %vm221
      %v223 = vsel %vm222, %v215, %v219
      %v224 = vand.u32 2147483647, %v169
      %vm225 = vcmp.eq.f32.partialorder %v224, 8.507059e+37
      %v226 = vand.u32 %v169, 2147483648
      %v227 = vor.u32 1.1754944e-38, %v226
      %v228 = vsel %vm225, %v227, %v223
      %v229 = vmul.f32 1.0, %v228
      %v230 = vld [vmem:[%s1] sm:$0xff]
      %v231 = vld [vmem:[%s1 + $0x8] sm:$0xff]
      %v232 = vld [vmem:[%s1 + $0x10] sm:$0xff]
      %v233 = vld [vmem:[%s1 + $0x18] sm:$0xff]
      %v234 = vld [vmem:[%s1 + $0x20] sm:$0xff]
      %v235 = vld [vmem:[%s1 + $0x28] sm:$0xff]
      %v236 = vld [vmem:[%s1 + $0x30] sm:$0xff]
      %v237 = vld [vmem:[%s1 + $0x38] sm:$0xff]
      %v238 = vld [vmem:[%s1 + $0x40] sm:$0xff]
      %v239 = vld [vmem:[%s1 + $0x48] sm:$0xff]
      %v240 = vld [vmem:[%s1 + $0x50] sm:$0xff]
      %v241 = vld [vmem:[%s1 + $0x58] sm:$0xff]
      %v242 = vld [vmem:[%s1 + $0x60] sm:$0xff]
      %v243 = vld [vmem:[%s1 + $0x68] sm:$0xff]
      %v244 = vld [vmem:[%s1 + $0x70] sm:$0xff]
      %v245 = vld [vmem:[%s1 + $0x78] sm:$0xff]
      %v246 = vld [vmem:[%s1 + $0x80] sm:$0xff]
      %v247 = vld [vmem:[%s1 + $0x88] sm:$0xff]
      %v248 = vld [vmem:[%s1 + $0x90] sm:$0xff]
      %v249 = vld [vmem:[%s1 + $0x98] sm:$0xff]
      %v250 = vld [vmem:[%s1 + $0xa0] sm:$0xff]
      %v251 = vld [vmem:[%s1 + $0xa8] sm:$0xff]
      %v252 = vld [vmem:[%s1 + $0xb0] sm:$0xff]
      %v253 = vld [vmem:[%s1 + $0xb8] sm:$0xff]
      %v254 = vld [vmem:[%s1 + $0xc0] sm:$0xff]
      %v255 = vld [vmem:[%s1 + $0xc8] sm:$0xff]
      %v256 = vld [vmem:[%s1 + $0xd0] sm:$0xff]
      %v257 = vld [vmem:[%s1 + $0xd8] sm:$0xff]
      %v258 = vld [vmem:[%s1 + $0xe0] sm:$0xff]
      %v259 = vld [vmem:[%s1 + $0xe8] sm:$0xff]
      %v260 = vld [vmem:[%s1 + $0xf0] sm:$0xff]
      %v261 = vld [vmem:[%s1 + $0xf8] sm:$0xff]
      %262 = vmatpush.msra.mxu0 %v245
      %263 = vmatpush.msra.mxu0 %v244
      %264 = vmatpush.msra.mxu0 %v243
      %265 = vmatpush.msra.mxu0 %v242
      %266 = vmatpush.msra.mxu0 %v241
      %267 = vmatpush.msra.mxu0 %v240
      %268 = vmatpush.msra.mxu0 %v239
      %269 = vmatpush.msra.mxu0 %v238
      %270 = vmatpush.msra.mxu0 %v237
      %271 = vmatpush.msra.mxu0 %v236
      %272 = vmatpush.msra.mxu0 %v235
      %273 = vmatpush.msra.mxu0 %v234
      %274 = vmatpush.msra.mxu0 %v233
      %275 = vmatpush.msra.mxu0 %v232
      %276 = vmatpush.msra.mxu0 %v231
      %277 = vmatpush.msra.mxu0 %v230
      %278 = vmatmul.f32.gmra.mxu0 %v184
      %v279 = vpop.f32.mrf.mxu0
      %v280 = vadd.f32 0.0, %v279
      %281 = vmatmul.f32.gmra.mxu0 %v214
      %v282 = vpop.f32.mrf.mxu0
      %v283 = vadd.f32 0.0, %v282
      %284 = vdwg.mxu0
      %285 = vmatpush.msra.mxu0 %v261
      %286 = vmatpush.msra.mxu0 %v260
      %287 = vmatpush.msra.mxu0 %v259
      %288 = vmatpush.msra.mxu0 %v258
      %289 = vmatpush.msra.mxu0 %v257
      %290 = vmatpush.msra.mxu0 %v256
      %291 = vmatpush.msra.mxu0 %v255
      %292 = vmatpush.msra.mxu0 %v254
      %293 = vmatpush.msra.mxu0 %v253
      %294 = vmatpush.msra.mxu0 %v252
      %295 = vmatpush.msra.mxu0 %v251
      %296 = vmatpush.msra.mxu0 %v250
      %297 = vmatpush.msra.mxu0 %v249
      %298 = vmatpush.msra.mxu0 %v248
      %299 = vmatpush.msra.mxu0 %v247
      %300 = vmatpush.msra.mxu0 %v246
      %301 = vmatmul.f32.gmra.mxu0 %v199
      %v302 = vpop.f32.mrf.mxu0
      %v303 = vadd.f32 %v280, %v302
      %304 = vmatmul.f32.gmra.mxu0 %v229
      %v305 = vpop.f32.mrf.mxu0
      %v306 = vadd.f32 %v283, %v305
      %307 = vdwg.mxu0
      %308 = vst [vmem:[%s148] sm:$0xff] %v303
      %309 = vst [vmem:[%s148 + $0x8] sm:$0xff] %v306
      %s310 = smul.u32 2, %s13
      %p311 = scmp.lt.s32.totalorder %s310, 3
      %s312 = scalar_select %p311, %s310, 3
      %s313 = smul.addr %s312, 8
      %s314 = scalar_lea.vmem %s2, %s313
      // Predicated region
      $region29: #{post_process_grounding.1} parent=27 // pred_check
        %p315 = pneg %p78
      $region30: #{post_process_grounding.1} parent=27 // pred_check_branch
        %317 = sbr.rel (%p315) target = $region32
      $region31: #{post_process_grounding.1} parent=27 // pred_region
        %s318 = smul.u32 2, %s13
      $region32: #{post_process_grounding.1} parent=27 // pred_fallthru
        _
    $region28: #{post_process_grounding.1} parent=5 // pred_fallthru
      _
    %p319 = scmp.le.s32.totalorder 2, %s8
    // Predicated region
    $region33: #{post_process_grounding.1} parent=5 // pred_check
      %p320 = pneg %p319
    $region34: #{post_process_grounding.1} parent=5 // pred_check_branch
      %322 = sbr.rel (%p320) target = $region36
    $region35: #{post_process_grounding.1} parent=5 // pred_region
      %s323 = ssub.s32 %s8, 2
      // Predicated region
      $region37: #{post_process_grounding.1} parent=35 // pred_check
        %p324 = pneg %p84
      $region38: #{post_process_grounding.1} parent=35 // pred_check_branch
        %326 = sbr.rel (%p324) target = $region40
      $region39: #{post_process_grounding.1} parent=35 // pred_region
        %s327 = smul.u32 2, %s14
        %p328 = scmp.lt.s32.totalorder %s327, 3
        %s329 = scalar_select %p328, %s327, 3
        %s330 = smul.addr %s329, 8
        %s331 = scalar_lea.vmem %s2, %s330
      $region40: #{post_process_grounding.1} parent=35 // pred_fallthru
        _
    $region36: #{post_process_grounding.1} parent=5 // pred_fallthru
      _
  $region6: #{post_process_grounding.1} parent=0 // loop_footer
    %s12 = sadd.s32 1, %s8
  $region7: #{post_process_grounding.1} parent=0 // loop_footer_branch
    %7 = sbr.rel target = $region3
  $region8: #{post_process_grounding.1} parent=0 // loop_exit
    _

</llo_original>
